<compile_context>
chip_gen: v6e
topology: v6e:2x2x1
jax: 0.10.0
libtpu: 0.0.40
codegen_flags: <defaults>
</compile_context>

<pallas_src>
import jax
import jax.numpy as jnp
from jax.experimental import pallas as pl
from jax.experimental.pallas import tpu as pltpu


def _round_up(x, m):
    return ((x + m - 1) // m) * m


def qnetwork_kernel(s_ref, a_ref,
                    w1s_ref, w1a_ref, b1_ref,
                    w2_ref, b2_ref,
                    w3t_ref, b3_ref,
                    out_ref):
    # Layer 1: split matmul replaces the lane-axis concat(state, action).
    # Activations arrive f32; the bf16 cast here is VPU work hidden under the
    # MXU dots (avoids a separate HBM pass in the wrapper).
    s = s_ref[...].astype(jnp.bfloat16)
    a = a_ref[...].astype(jnp.bfloat16)
    h1 = (jnp.dot(s, w1s_ref[...], preferred_element_type=jnp.float32)
          + jnp.dot(a, w1a_ref[...], preferred_element_type=jnp.float32)
          + b1_ref[...])
    h1 = jnp.maximum(h1, 0.0)

    # Layer 2: bf16 MXU operands, f32 accumulation + f32 bias/ReLU.
    h2 = jnp.dot(h1.astype(jnp.bfloat16), w2_ref[...],
                 preferred_element_type=jnp.float32) + b2_ref[...]
    h2 = jnp.maximum(h2, 0.0)

    # Layer 3 (256 -> 1): f32 VPU multiply against the broadcast W3 row plus a
    # lane reduce (XLU). No zero-padded MXU flops, and the store is a single
    # (TB, 1) column -> 4 B/row HBM writeback.
    w3_row = w3t_ref[...]                                  # (1, 256) f32
    q = jnp.sum(h2 * w3_row, axis=-1, keepdims=True) + b3_ref[0, 0]
    out_ref[...] = q


def qnetwork_forward(state, action, params, *, block_b=4096):
    """state: (B, n_obs) f32, action: (B, n_act) f32 -> (B, 1) f32."""
    w1, b1, w2, b2, w3, b3 = params
    B, n_obs = state.shape
    n_act = action.shape[1]
    H = w1.shape[1]

    # Batch tile: multiple of 8 (sublane), capped at block_b (multiple of 256).
    TB = min(block_b, _round_up(B, 8))
    # v7x has 2 TensorCores; for large batches force >= 2 grid steps so the
    # "parallel" batch axis can be sharded across both cores. (No-op on
    # v5e/v6e and for tiny batches, which are launch-bound anyway.)
    if B > 512 and _round_up(B, TB) == TB:
        TB = min(TB, _round_up(pl.cdiv(B, 2), 256))
    B_pad = _round_up(B, TB)
    if B_pad != B:
        pad = B_pad - B
        state = jnp.pad(state, ((0, pad), (0, 0)))
        action = jnp.pad(action, ((0, pad), (0, 0)))

    # Split W1 so the kernel never concatenates along the lane axis.
    w1_s, w1_a = w1[:n_obs], w1[n_obs:]

    # One-time weight casts to bf16 for the MXU; biases / W3 / output stay f32.
    bf16 = lambda t: t.astype(jnp.bfloat16)
    w1_s_b, w1_a_b, w2_b = bf16(w1_s), bf16(w1_a), bf16(w2)
    b1_f = b1.reshape(1, H).astype(jnp.float32)
    b2_f = b2.reshape(1, H).astype(jnp.float32)
    w3t_f = w3.reshape(1, H).astype(jnp.float32)   # (H, 1) column -> (1, H) row
    b3_f = b3.reshape(1, 1).astype(jnp.float32)

    grid = (B_pad // TB,)

    def resident(shape):
        # Weight/bias blocks: same block every grid step -> fetched once.
        return pl.BlockSpec(shape, lambda i: (0, 0))

    out = pl.pallas_call(
        qnetwork_kernel,
        out_shape=jax.ShapeDtypeStruct((B_pad, 1), jnp.float32),
        grid=grid,
        in_specs=[
            pl.BlockSpec((TB, n_obs), lambda i: (i, 0)),        # state tile (f32)
            pl.BlockSpec((TB, n_act), lambda i: (i, 0)),        # action tile (f32)
            resident((n_obs, H)),                               # W1 (state part)
            resident((n_act, H)),                               # W1 (action part)
            resident((1, H)),                                   # b1
            resident((H, H)),                                   # W2
            resident((1, H)),                                   # b2
            resident((1, H)),                                   # W3 row (f32)
            pl.BlockSpec(memory_space=pltpu.MemorySpace.SMEM),  # b3 scalar
        ],
        out_specs=pl.BlockSpec((TB, 1), lambda i: (i, 0)),
        compiler_params=pltpu.CompilerParams(
            dimension_semantics=("parallel",)),
    )(state, action, w1_s_b, w1_a_b, b1_f, w2_b, b2_f, w3t_f, b3_f)

    # Drop batch padding (padded rows carry ReLU(b1)-propagated garbage).
    return out[:B] if B_pad != B else out
    # TODO(synk): for the true tiny-batch deployment shape (B~8), amortize
    # launch overhead by stacking twin/ensemble critics and multiple (s, a)
    # evaluations along the batch axis of a single pallas_call.


def init_params(key, n_obs, n_act, hidden=256):
    """Deterministic PyTorch-style init: U(-1/sqrt(fan_in), 1/sqrt(fan_in))."""
    def linear(k, fan_in, fan_out):
        kw, kb = jax.random.split(k)
        bound = 1.0 / jnp.sqrt(float(fan_in))
        w = jax.random.uniform(kw, (fan_in, fan_out), jnp.float32, -bound, bound)
        b = jax.random.uniform(kb, (1, fan_out), jnp.float32, -bound, bound)
        return w, b

    k1, k2, k3 = jax.random.split(key, 3)
    w1, b1 = linear(k1, n_obs + n_act, hidden)
    w2, b2 = linear(k2, hidden, hidden)
    w3, b3 = linear(k3, hidden, 1)
    return (w1, b1, w2, b2, w3, b3)


def qnetwork_reference(state, action, params, *, matmul_dtype=jnp.float32):
    """Pure-JAX reference. matmul_dtype=bfloat16 mirrors the kernel's recipe
    (layers 1/2 in bf16 operands + f32 accumulation; layer 3 always f32)."""
    w1, b1, w2, b2, w3, b3 = params
    c = lambda t: t.astype(matmul_dtype)
    x = jnp.concatenate([state, action], axis=1)
    h1 = jnp.maximum(
        jnp.dot(c(x), c(w1), preferred_element_type=jnp.float32) + b1, 0.0)
    h2 = jnp.maximum(
        jnp.dot(c(h1), c(w2), preferred_element_type=jnp.float32) + b2, 0.0)
    return jnp.dot(h2, w3.astype(jnp.float32),
                   preferred_element_type=jnp.float32) + b3


if __name__ == "__main__":
    key = jax.random.PRNGKey(0)
    k_s, k_a, k_p = jax.random.split(key, 3)

    # Small shapes consistent with a continuous-control env.
    B, n_obs, n_act = 8, 12, 4
    state = jax.random.normal(k_s, (B, n_obs), jnp.float32)
    action = jax.random.normal(k_a, (B, n_act), jnp.float32)
    params = init_params(k_p, n_obs, n_act)

    out = qnetwork_forward(state, action, params)
    out = jax.block_until_ready(out)
    assert out.shape == (B, 1)

    # Tight check against a reference using the kernel's bf16/f32 recipe.
    ref_bf16 = qnetwork_reference(state, action, params, matmul_dtype=jnp.bfloat16)
    assert jnp.allclose(out, ref_bf16, atol=2e-3, rtol=2e-3)

    # Loose check against the pure-f32 module semantics (bf16 matmul rounding).
    ref_f32 = qnetwork_reference(state, action, params, matmul_dtype=jnp.float32)
    assert jnp.allclose(out, ref_f32, atol=3e-2, rtol=3e-2)

    # Exercise the batch-padding path (B not a multiple of the sublane tile).
    B2 = 50
    k_s2, k_a2 = jax.random.split(jax.random.PRNGKey(1))
    state2 = jax.random.normal(k_s2, (B2, n_obs), jnp.float32)
    action2 = jax.random.normal(k_a2, (B2, n_act), jnp.float32)
    out2 = jax.block_until_ready(qnetwork_forward(state2, action2, params))
    assert out2.shape == (B2, 1)
    ref2 = qnetwork_reference(state2, action2, params, matmul_dtype=jnp.bfloat16)
    assert jnp.allclose(out2, ref2, atol=2e-3, rtol=2e-3)

    print("KERNEL_OK")
</pallas_src>

<mosaic_0001>
module attributes {stable_mosaic.version = 11 : i64} {
  func.func @qnetwork_kernel(%arg0: i32, %arg1: memref<8x12xf32, #tpu.memory_space<vmem>>, %arg2: memref<8x4xf32, #tpu.memory_space<vmem>>, %arg3: memref<12x256xbf16, #tpu.memory_space<vmem>>, %arg4: memref<4x256xbf16, #tpu.memory_space<vmem>>, %arg5: memref<1x256xf32, #tpu.memory_space<vmem>>, %arg6: memref<256x256xbf16, #tpu.memory_space<vmem>>, %arg7: memref<1x256xf32, #tpu.memory_space<vmem>>, %arg8: memref<1x256xf32, #tpu.memory_space<vmem>>, %arg9: memref<1x1xf32, #tpu.memory_space<smem>>, %arg10: memref<8x1xf32, #tpu.memory_space<vmem>>) attributes {dimension_semantics = [#tpu.dimension_semantics<parallel>], iteration_bounds = array<i64: 1>, scalar_prefetch = 0 : i64, scratch_operands = 0 : i64, tpu.core_type = #tpu.core_type<tc>, window_params = [{transform_indices = @transform_0, window_bounds = array<i64: 8, 12>}, {transform_indices = @transform_1, window_bounds = array<i64: 8, 4>}, {pipeline_mode = #tpu.pipeline_mode<synchronous>, transform_indices = @transform_2, window_bounds = array<i64: 12, 256>}, {pipeline_mode = #tpu.pipeline_mode<synchronous>, transform_indices = @transform_3, window_bounds = array<i64: 4, 256>}, {pipeline_mode = #tpu.pipeline_mode<synchronous>, transform_indices = @transform_4, window_bounds = array<i64: 1, 256>}, {pipeline_mode = #tpu.pipeline_mode<synchronous>, transform_indices = @transform_5, window_bounds = array<i64: 256, 256>}, {pipeline_mode = #tpu.pipeline_mode<synchronous>, transform_indices = @transform_6, window_bounds = array<i64: 1, 256>}, {pipeline_mode = #tpu.pipeline_mode<synchronous>, transform_indices = @transform_7, window_bounds = array<i64: 1, 256>}, {transform_indices = @transform_8, window_bounds = array<i64: 1, 1>}, {transform_indices = @transform_9, window_bounds = array<i64: 8, 1>}]} {
    %c0 = arith.constant 0 : index
    %c0_0 = arith.constant 0 : index
    %0 = vector.load %arg1[%c0, %c0_0] : memref<8x12xf32, #tpu.memory_space<vmem>>, vector<8x12xf32>
    %1 = arith.truncf %0 : vector<8x12xf32> to vector<8x12xbf16>
    %c0_1 = arith.constant 0 : index
    %c0_2 = arith.constant 0 : index
    %2 = vector.load %arg2[%c0_1, %c0_2] : memref<8x4xf32, #tpu.memory_space<vmem>>, vector<8x4xf32>
    %3 = arith.truncf %2 : vector<8x4xf32> to vector<8x4xbf16>
    %c0_3 = arith.constant 0 : index
    %c0_4 = arith.constant 0 : index
    %4 = vector.load %arg3[%c0_3, %c0_4] : memref<12x256xbf16, #tpu.memory_space<vmem>>, vector<12x256xbf16>
    %cst = arith.constant dense<0.000000e+00> : vector<8x256xf32>
    %5 = tpu.matmul %1, %4, %cst {dimension_numbers = #tpu.dot_dimension_numbers<[1], [0], [0], [1], [0, 0, 1, 1], [], []>} : vector<8x12xbf16>, vector<12x256xbf16>, vector<8x256xf32> -> vector<8x256xf32>
    %c0_5 = arith.constant 0 : index
    %c0_6 = arith.constant 0 : index
    %6 = vector.load %arg4[%c0_5, %c0_6] : memref<4x256xbf16, #tpu.memory_space<vmem>>, vector<4x256xbf16>
    %cst_7 = arith.constant dense<0.000000e+00> : vector<8x256xf32>
    %7 = tpu.matmul %3, %6, %cst_7 {dimension_numbers = #tpu.dot_dimension_numbers<[1], [0], [0], [1], [0, 0, 1, 1], [], []>} : vector<8x4xbf16>, vector<4x256xbf16>, vector<8x256xf32> -> vector<8x256xf32>
    %8 = arith.addf %5, %7 : vector<8x256xf32>
    %c0_8 = arith.constant 0 : index
    %c0_9 = arith.constant 0 : index
    %9 = vector.load %arg5[%c0_8, %c0_9] : memref<1x256xf32, #tpu.memory_space<vmem>>, vector<1x256xf32>
    %10 = vector.broadcast %9 : vector<1x256xf32> to vector<8x256xf32>
    %11 = arith.addf %8, %10 : vector<8x256xf32>
    %cst_10 = arith.constant 0.000000e+00 : f32
    %12 = vector.broadcast %cst_10 : f32 to vector<8x256xf32>
    %13 = arith.maximumf %11, %12 : vector<8x256xf32>
    %14 = arith.truncf %13 : vector<8x256xf32> to vector<8x256xbf16>
    %c0_11 = arith.constant 0 : index
    %c0_12 = arith.constant 0 : index
    %15 = vector.load %arg6[%c0_11, %c0_12] : memref<256x256xbf16, #tpu.memory_space<vmem>>, vector<256x256xbf16>
    %cst_13 = arith.constant dense<0.000000e+00> : vector<8x256xf32>
    %16 = tpu.matmul %14, %15, %cst_13 {dimension_numbers = #tpu.dot_dimension_numbers<[1], [0], [0], [1], [0, 0, 1, 1], [], []>} : vector<8x256xbf16>, vector<256x256xbf16>, vector<8x256xf32> -> vector<8x256xf32>
    %c0_14 = arith.constant 0 : index
    %c0_15 = arith.constant 0 : index
    %17 = vector.load %arg7[%c0_14, %c0_15] : memref<1x256xf32, #tpu.memory_space<vmem>>, vector<1x256xf32>
    %18 = vector.broadcast %17 : vector<1x256xf32> to vector<8x256xf32>
    %19 = arith.addf %16, %18 : vector<8x256xf32>
    %cst_16 = arith.constant 0.000000e+00 : f32
    %20 = vector.broadcast %cst_16 : f32 to vector<8x256xf32>
    %21 = arith.maximumf %19, %20 : vector<8x256xf32>
    %c0_17 = arith.constant 0 : index
    %c0_18 = arith.constant 0 : index
    %22 = vector.load %arg8[%c0_17, %c0_18] : memref<1x256xf32, #tpu.memory_space<vmem>>, vector<1x256xf32>
    %23 = vector.broadcast %22 : vector<1x256xf32> to vector<8x256xf32>
    %24 = arith.mulf %21, %23 : vector<8x256xf32>
    %cst_19 = arith.constant dense<0.000000e+00> : vector<8xf32>
    %25 = vector.multi_reduction <add>, %24, %cst_19 [1] : vector<8x256xf32> to vector<8xf32>
    %26 = vector.shape_cast %25 : vector<8xf32> to vector<8x1xf32>
    %c0_20 = arith.constant 0 : index
    %c0_21 = arith.constant 0 : index
    %27 = memref.load %arg9[%c0_20, %c0_21] : memref<1x1xf32, #tpu.memory_space<smem>>
    %28 = vector.broadcast %27 : f32 to vector<8x1xf32>
    %29 = arith.addf %26, %28 : vector<8x1xf32>
    %c0_22 = arith.constant 0 : index
    %c0_23 = arith.constant 0 : index
    %30 = vector.load %arg10[%c0_22, %c0_23] : memref<8x1xf32, #tpu.memory_space<vmem>>, vector<8x1xf32>
    tpu.vector_store %arg10[%c0_22, %c0_23], %29 {strides = array<i32>} : memref<8x1xf32, #tpu.memory_space<vmem>>, vector<8x1xf32>,
    return
  }
  func.func @transform_0(%arg0: i32) -> (i32, i32) {
    %c0_i32 = arith.constant 0 : i32
    %c0_i32_0 = arith.constant 0 : i32
    return %arg0, %c0_i32 : i32, i32
  }
  func.func @transform_1(%arg0: i32) -> (i32, i32) {
    %c0_i32 = arith.constant 0 : i32
    %c0_i32_0 = arith.constant 0 : i32
    return %arg0, %c0_i32 : i32, i32
  }
  func.func @transform_2(%arg0: i32) -> (i32, i32) {
    %c0_i32 = arith.constant 0 : i32
    %c0_i32_0 = arith.constant 0 : i32
    %c0_i32_1 = arith.constant 0 : i32
    return %c0_i32, %c0_i32_0 : i32, i32
  }
  func.func @transform_3(%arg0: i32) -> (i32, i32) {
    %c0_i32 = arith.constant 0 : i32
    %c0_i32_0 = arith.constant 0 : i32
    %c0_i32_1 = arith.constant 0 : i32
    return %c0_i32, %c0_i32_0 : i32, i32
  }
  func.func @transform_4(%arg0: i32) -> (i32, i32) {
    %c0_i32 = arith.constant 0 : i32
    %c0_i32_0 = arith.constant 0 : i32
    %c0_i32_1 = arith.constant 0 : i32
    return %c0_i32, %c0_i32_0 : i32, i32
  }
  func.func @transform_5(%arg0: i32) -> (i32, i32) {
    %c0_i32 = arith.constant 0 : i32
    %c0_i32_0 = arith.constant 0 : i32
    %c0_i32_1 = arith.constant 0 : i32
    return %c0_i32, %c0_i32_0 : i32, i32
  }
  func.func @transform_6(%arg0: i32) -> (i32, i32) {
    %c0_i32 = arith.constant 0 : i32
    %c0_i32_0 = arith.constant 0 : i32
    %c0_i32_1 = arith.constant 0 : i32
    return %c0_i32, %c0_i32_0 : i32, i32
  }
  func.func @transform_7(%arg0: i32) -> (i32, i32) {
    %c0_i32 = arith.constant 0 : i32
    %c0_i32_0 = arith.constant 0 : i32
    %c0_i32_1 = arith.constant 0 : i32
    return %c0_i32, %c0_i32_0 : i32, i32
  }
  func.func @transform_8(%arg0: i32) -> (i32, i32) {
    %c0_i32 = arith.constant 0 : i32
    %c0_i32_0 = arith.constant 0 : i32
    %c0_i32_1 = arith.constant 0 : i32
    return %c0_i32, %c0_i32_0 : i32, i32
  }
  func.func @transform_9(%arg0: i32) -> (i32, i32) {
    %c0_i32 = arith.constant 0 : i32
    %c0_i32_0 = arith.constant 0 : i32
    return %arg0, %c0_i32 : i32, i32
  }
}

</mosaic_0001>

<llo_original>
// kernel: tpu_custom_call.1
$region0: #{tpu_custom_call.1}
  #allocation0 [shape = 'u32[]', space=smem, size = 0x4, offset = 0x4, fixed_abs, tag = 'smem constant byte address 0x4 - core index']
  #allocation1 [shape = 'u32[144,128]{1,0:T(1,128)}', space=vmem, size = 0x12000, scoped, tag = 'internal scratch']
  #allocation2 [shape = 'f32[1,1]{1,0:T(1,128)S(6)}', space=smem, size = 0x200, scoped, tag = 'scoped memory for tpu_custom_call.1']
  %s0 = inlined_call_operand.hbm [shape: f32[8,12], index: 0, kind: input, shape index: {}]
  %s1 = inlined_call_operand.vmem [shape: f32[8,4], index: 1, kind: input, shape index: {}]
  %s2 = inlined_call_operand.vmem [shape: bf16[12,256], index: 2, kind: input, shape index: {}]
  %s3 = inlined_call_operand.hbm [shape: bf16[4,256], index: 3, kind: input, shape index: {}]
  %s4 = inlined_call_operand.vmem [shape: f32[1,256], index: 4, kind: input, shape index: {}]
  %s5 = inlined_call_operand.hbm [shape: bf16[256,256], index: 5, kind: input, shape index: {}]
  %s6 = inlined_call_operand.vmem [shape: f32[1,256], index: 6, kind: input, shape index: {}]
  %s7 = inlined_call_operand.vmem [shape: f32[1,256], index: 7, kind: input, shape index: {}]
  %s8 = inlined_call_operand.<no memory space> [shape: f32[1,1], index: 8, kind: input, shape index: {}]
  %s9 = inlined_call_operand.vmem [shape: f32[8,1], index: 9, kind: output, shape index: {}]
  %s10 = sld [smem:[#allocation0]]
  $region58: #{tpu_custom_call.1} parent=0
    _
  %s12 = ssub.s32 1, %s10
  %s13 = scalar_select 0, %s12, %s10
  %14 = sst [smem:[#allocation2]] %s8
  $region1: #{tpu_custom_call.1} parent=0
    #allocation3 [shape = 'u8[4096]{0}', space=vmem, size = 0x1000, scoped, tag = 'input window, operand 0, single buffered']
    #allocation4 [shape = 's32[1]{0}', space=sflag, size = 0x4, scoped, tag = 'scoped memory for tpu_custom_call.1']
    #allocation5 [shape = 'u8[2048]{0}', space=vmem, size = 0x800, scoped, tag = 'input window, operand 3, single buffered']
    #allocation6 [shape = 's32[1]{0}', space=sflag, size = 0x4, scoped, tag = 'scoped memory for tpu_custom_call.1']
    #allocation7 [shape = 'u8[131072]{0}', space=vmem, size = 0x20000, scoped, tag = 'input window, operand 5, single buffered']
    %15 = vsyncpa [#allocation4], 0
    %16 = vsyncpa [#allocation6], 0
    // Predicated region
    $region2: #{tpu_custom_call.1} parent=1 // pred_check
      _
    $region3: #{tpu_custom_call.1} parent=1 // pred_check_branch
      %18 = sbr.rel (0) target = $region5
    $region4: #{tpu_custom_call.1} parent=1 // pred_region
      %s20 = ssub.s32 128, 128
      %21 = vsyncadd [#allocation4], %s20
      %s23 = sshll.u32 [#allocation3], 4
      %s24 = int_to_ptr.vmem [resolvable:$true] %s23
      %26 = dma.hbm_to_vmem [thread:$0]  %s0, 128, %s24, [#allocation4]
    $region5: #{tpu_custom_call.1} parent=1 // pred_fallthru
      _
    // Predicated region
    $region6: #{tpu_custom_call.1} parent=1 // pred_check
      _
    $region7: #{tpu_custom_call.1} parent=1 // pred_check_branch
      %28 = sbr.rel (0) target = $region9
    $region8: #{tpu_custom_call.1} parent=1 // pred_region
      _
    $region9: #{tpu_custom_call.1} parent=1 // pred_fallthru
      _
    // Predicated region
    $region10: #{tpu_custom_call.1} parent=1 // pred_check
      _
    $region11: #{tpu_custom_call.1} parent=1 // pred_check_branch
      %30 = sbr.rel (0) target = $region13
    $region12: #{tpu_custom_call.1} parent=1 // pred_region
      _
    $region13: #{tpu_custom_call.1} parent=1 // pred_fallthru
      _
    // Predicated region
    $region14: #{tpu_custom_call.1} parent=1 // pred_check
      _
    $region15: #{tpu_custom_call.1} parent=1 // pred_check_branch
      %32 = sbr.rel (0) target = $region17
    $region16: #{tpu_custom_call.1} parent=1 // pred_region
      %s34 = ssub.s32 64, 64
      %35 = vsyncadd [#allocation6], %s34
      %s37 = sshll.u32 [#allocation5], 4
      %s38 = int_to_ptr.vmem [resolvable:$true] %s37
      %40 = dma.hbm_to_vmem [thread:$0]  %s3, 64, %s38, [#allocation6]
    $region17: #{tpu_custom_call.1} parent=1 // pred_fallthru
      _
    // Predicated region
    $region18: #{tpu_custom_call.1} parent=1 // pred_check
      _
    $region19: #{tpu_custom_call.1} parent=1 // pred_check_branch
      %42 = sbr.rel (0) target = $region21
    $region20: #{tpu_custom_call.1} parent=1 // pred_region
      _
    $region21: #{tpu_custom_call.1} parent=1 // pred_fallthru
      _
    // Predicated region
    $region22: #{tpu_custom_call.1} parent=1 // pred_check
      _
    $region23: #{tpu_custom_call.1} parent=1 // pred_check_branch
      %44 = sbr.rel (0) target = $region25
    $region24: #{tpu_custom_call.1} parent=1 // pred_region
      %s46 = ssub.s32 4096, 4096
      %47 = vsyncadd [#allocation6], %s46
      %s48 = sshll.u32 [#allocation7], 4
      %s49 = int_to_ptr.vmem [resolvable:$true] %s48
      %54 = dma.hbm_to_vmem [thread:$0]  %s5, 4096, %s49, [#allocation6], 128, 128, 8
    $region25: #{tpu_custom_call.1} parent=1 // pred_fallthru
      _
    // Predicated region
    $region26: #{tpu_custom_call.1} parent=1 // pred_check
      _
    $region27: #{tpu_custom_call.1} parent=1 // pred_check_branch
      %56 = sbr.rel (0) target = $region29
    $region28: #{tpu_custom_call.1} parent=1 // pred_region
      _
    $region29: #{tpu_custom_call.1} parent=1 // pred_fallthru
      _
    // Predicated region
    $region30: #{tpu_custom_call.1} parent=1 // pred_check
      _
    $region31: #{tpu_custom_call.1} parent=1 // pred_check_branch
      %58 = sbr.rel (0) target = $region33
    $region32: #{tpu_custom_call.1} parent=1 // pred_region
      _
    $region33: #{tpu_custom_call.1} parent=1 // pred_fallthru
      _
    // Predicated region
    $region34: #{tpu_custom_call.1} parent=1 // pred_check
      _
    $region35: #{tpu_custom_call.1} parent=1 // pred_check_branch
      %60 = sbr.rel (0) target = $region37
    $region36: #{tpu_custom_call.1} parent=1 // pred_region
      _
    $region37: #{tpu_custom_call.1} parent=1 // pred_fallthru
      _
    // Predicated region
    $region38: #{tpu_custom_call.1} parent=1 // pred_check
      _
    $region39: #{tpu_custom_call.1} parent=1 // pred_check_branch
      %62 = sbr.rel (0) target = $region41
    $region40: #{tpu_custom_call.1} parent=1 // pred_region
      %63 = dma.done [#allocation4], 128
    $region41: #{tpu_custom_call.1} parent=1 // pred_fallthru
      _
    // Predicated region
    $region42: #{tpu_custom_call.1} parent=1 // pred_check
      _
    $region43: #{tpu_custom_call.1} parent=1 // pred_check_branch
      %65 = sbr.rel (0) target = $region45
    $region44: #{tpu_custom_call.1} parent=1 // pred_region
      %66 = dma.done [#allocation6], 64
    $region45: #{tpu_custom_call.1} parent=1 // pred_fallthru
      _
    // Predicated region
    $region46: #{tpu_custom_call.1} parent=1 // pred_check
      _
    $region47: #{tpu_custom_call.1} parent=1 // pred_check_branch
      %68 = sbr.rel (0) target = $region49
    $region48: #{tpu_custom_call.1} parent=1 // pred_region
      %69 = dma.done [#allocation6], 4096
    $region49: #{tpu_custom_call.1} parent=1 // pred_fallthru
      _
    %v71 = vld [vmem:[#allocation3] sm:$0xff]
    %v72 = vpack.c.bf16 %v71, %v71
    %v73 = vld [vmem:[%s1] sm:$0xff]
    %v74 = vpack.c.bf16 %v73, %v73
    %v75 = vld [vmem:[%s2] sm:$0xff]
    %v76 = vld [vmem:[%s2 + $0x8] sm:$0x33]
    %v77 = vld [vmem:[#allocation5] sm:$0xf]
    %v80 = vunpack.c.l.s4 1983009808
    %v81 = vunpack.c.0.s8 %v80
    %v82 = vlaneseq
    %v83 = vshrl.u32 %v82, 7
    %v84 = vsub.s32 %v81, %v83
    %v85 = vrot.slane %v77, %v84
    %v86 = vcombine.high %v85, %v85
    %vm87 = vcmask 31744
    %v89 = vsel %vm87, %v74, 0
    %vm91 = vcmask 1041408
    %v93 = vsel %vm91, %v85, 0
    %v96 = vsel %vm91, %v86, 0
    %98 = vmatprep.subr.bf16.mxu0 0
    %99 = vmatpush1.bf16.msra.mxu0 0
    %100 = vmatprep.subr.bf16.mxu0 0
    %101 = vmatpush1.bf16.msra.mxu0 0
    %102 = vmatprep.subr.bf16.mxu0 0
    %103 = vmatpush1.bf16.msra.mxu0 0
    %104 = vmatprep.subr.bf16.mxu0 0
    %105 = vmatpush1.bf16.msra.mxu0 0
    %106 = vmatprep.subr.bf16.mxu0 0
    %107 = vmatpush1.bf16.msra.mxu0 0
    %108 = vmatprep.subr.bf16.mxu0 0
    %109 = vmatpush1.bf16.msra.mxu0 0
    %110 = vmatprep.subr.bf16.mxu0 0
    %111 = vmatpush1.bf16.msra.mxu0 0
    %112 = vmatprep.subr.bf16.mxu0 %v96
    %113 = vmatpush1.bf16.msra.mxu0 %v93
    %114 = vmatprep.subr.bf16.mxu0 0
    %115 = vmatpush2.bf16.msra.mxu0 0
    %116 = vmatprep.subr.bf16.mxu0 0
    %117 = vmatpush2.bf16.msra.mxu0 0
    %118 = vmatprep.subr.bf16.mxu0 0
    %119 = vmatpush2.bf16.msra.mxu0 0
    %120 = vmatprep.subr.bf16.mxu0 0
    %121 = vmatpush2.bf16.msra.mxu0 0
    %122 = vmatprep.subr.bf16.mxu0 0
    %123 = vmatpush2.bf16.msra.mxu0 0
    %124 = vmatprep.subr.bf16.mxu0 0
    %125 = vmatpush2.bf16.msra.mxu0 0
    %126 = vmatprep.subr.bf16.mxu0 0
    %127 = vmatpush2.bf16.msra.mxu0 0
    %128 = vmatprep.subr.bf16.mxu0 0
    %129 = vmatpush2.bf16.msra.mxu0 0
    %130 = vmatprep.mubr.bf16.mxu0 0
    %131 = vmatmul.mubr.bf16.gmra.mxu0 %v89
    %v132 = vpop.f32.mrf.mxu0
    %v133 = vadd.f32 0.0, %v132
    %v134 = vpop.f32.mrf.mxu0
    %v135 = vadd.f32 0.0, %v134
    %v136 = vpop.f32.mrf.mxu0
    %v137 = vpop.f32.mrf.mxu0
    %138 = vdwg.mxu0
    %v141 = vunpack.c.l.b16 %v75
    %v142 = vunpack.c.h.b16 %v75
    %v143 = vunpack.c.l.b16 %v76
    %v144 = vunpack.c.h.b16 %v76
    %v145 = vpack.c.b16 %v143, %v141
    %v146 = vpack.c.b16 %v144, %v142
    %vm147 = vcmask 97280
    %v149 = vsel %vm147, %v72, 0
    %vm151 = vcmask 1045504
    %v153 = vsel %vm151, %v145, 0
    %v156 = vsel %vm151, %v146, 0
    %158 = vmatprep.subr.bf16.mxu0 0
    %159 = vmatpush1.bf16.msra.mxu0 0
    %160 = vmatprep.subr.bf16.mxu0 0
    %161 = vmatpush1.bf16.msra.mxu0 0
    %162 = vmatprep.subr.bf16.mxu0 0
    %163 = vmatpush1.bf16.msra.mxu0 0
    %164 = vmatprep.subr.bf16.mxu0 0
    %165 = vmatpush1.bf16.msra.mxu0 0
    %166 = vmatprep.subr.bf16.mxu0 0
    %167 = vmatpush1.bf16.msra.mxu0 0
    %168 = vmatprep.subr.bf16.mxu0 0
    %169 = vmatpush1.bf16.msra.mxu0 0
    %170 = vmatprep.subr.bf16.mxu0 0
    %171 = vmatpush1.bf16.msra.mxu0 0
    %172 = vmatprep.subr.bf16.mxu0 %v156
    %173 = vmatpush1.bf16.msra.mxu0 %v153
    %174 = vmatprep.subr.bf16.mxu0 0
    %175 = vmatpush2.bf16.msra.mxu0 0
    %176 = vmatprep.subr.bf16.mxu0 0
    %177 = vmatpush2.bf16.msra.mxu0 0
    %178 = vmatprep.subr.bf16.mxu0 0
    %179 = vmatpush2.bf16.msra.mxu0 0
    %180 = vmatprep.subr.bf16.mxu0 0
    %181 = vmatpush2.bf16.msra.mxu0 0
    %182 = vmatprep.subr.bf16.mxu0 0
    %183 = vmatpush2.bf16.msra.mxu0 0
    %184 = vmatprep.subr.bf16.mxu0 0
    %185 = vmatpush2.bf16.msra.mxu0 0
    %186 = vmatprep.subr.bf16.mxu0 0
    %187 = vmatpush2.bf16.msra.mxu0 0
    %188 = vmatprep.subr.bf16.mxu0 0
    %189 = vmatpush2.bf16.msra.mxu0 0
    %190 = vmatprep.mubr.bf16.mxu0 0
    %191 = vmatmul.mubr.bf16.gmra.mxu0 %v149
    %v192 = vpop.f32.mrf.mxu0
    %v193 = vadd.f32 %v133, %v192
    %v194 = vpop.f32.mrf.mxu0
    %v195 = vadd.f32 %v135, %v194
    %v196 = vpop.f32.mrf.mxu0
    %v197 = vpop.f32.mrf.mxu0
    %198 = vdwg.mxu0
    %v199 = vld [vmem:[%s4] sm:$0x3]
    %v201 = vlaneseq
    %v202 = vshrl.u32 %v201, 7
    %v203 = vsub.s32 0, %v202
    %v204 = vrot.slane %v199, %v203
    %v205 = vlaneseq
    %v206 = vshrl.u32 %v205, 7
    %v207 = vsub.s32 1, %v206
    %v208 = vrot.slane %v199, %v207
    %v211 = vadd.f32 %v193, %v204
    %v212 = vadd.f32 %v195, %v208
    %v213 = vmax.f32 %v211, 0.0
    %v214 = vmax.f32 %v212, 0.0
    %v215 = vpack.c.bf16 %v213, %v213
    %v216 = vpack.c.bf16 %v214, %v214
    %v217 = vld [vmem:[#allocation7] sm:$0xff]
    %v218 = vld [vmem:[#allocation7 + $0x8] sm:$0xff]
    %v219 = vld [vmem:[#allocation7 + $0x10] sm:$0xff]
    %v220 = vld [vmem:[#allocation7 + $0x18] sm:$0xff]
    %v221 = vld [vmem:[#allocation7 + $0x20] sm:$0xff]
    %v222 = vld [vmem:[#allocation7 + $0x28] sm:$0xff]
    %v223 = vld [vmem:[#allocation7 + $0x30] sm:$0xff]
    %v224 = vld [vmem:[#allocation7 + $0x38] sm:$0xff]
    %v225 = vld [vmem:[#allocation7 + $0x40] sm:$0xff]
    %v226 = vld [vmem:[#allocation7 + $0x48] sm:$0xff]
    %v227 = vld [vmem:[#allocation7 + $0x50] sm:$0xff]
    %v228 = vld [vmem:[#allocation7 + $0x58] sm:$0xff]
    %v229 = vld [vmem:[#allocation7 + $0x60] sm:$0xff]
    %v230 = vld [vmem:[#allocation7 + $0x68] sm:$0xff]
    %v231 = vld [vmem:[#allocation7 + $0x70] sm:$0xff]
    %v232 = vld [vmem:[#allocation7 + $0x78] sm:$0xff]
    %v233 = vld [vmem:[#allocation7 + $0x80] sm:$0xff]
    %v234 = vld [vmem:[#allocation7 + $0x88] sm:$0xff]
    %v235 = vld [vmem:[#allocation7 + $0x90] sm:$0xff]
    %v236 = vld [vmem:[#allocation7 + $0x98] sm:$0xff]
    %v237 = vld [vmem:[#allocation7 + $0xa0] sm:$0xff]
    %v238 = vld [vmem:[#allocation7 + $0xa8] sm:$0xff]
    %v239 = vld [vmem:[#allocation7 + $0xb0] sm:$0xff]
    %v240 = vld [vmem:[#allocation7 + $0xb8] sm:$0xff]
    %v241 = vld [vmem:[#allocation7 + $0xc0] sm:$0xff]
    %v242 = vld [vmem:[#allocation7 + $0xc8] sm:$0xff]
    %v243 = vld [vmem:[#allocation7 + $0xd0] sm:$0xff]
    %v244 = vld [vmem:[#allocation7 + $0xd8] sm:$0xff]
    %v245 = vld [vmem:[#allocation7 + $0xe0] sm:$0xff]
    %v246 = vld [vmem:[#allocation7 + $0xe8] sm:$0xff]
    %v247 = vld [vmem:[#allocation7 + $0xf0] sm:$0xff]
    %v248 = vld [vmem:[#allocation7 + $0xf8] sm:$0xff]
    %v249 = vld [vmem:[%s6] sm:$0x3]
    %v251 = vlaneseq
    %v252 = vshrl.u32 %v251, 7
    %v253 = vsub.s32 0, %v252
    %v254 = vrot.slane %v249, %v253
    %v255 = vlaneseq
    %v256 = vshrl.u32 %v255, 7
    %v257 = vsub.s32 1, %v256
    %v258 = vrot.slane %v249, %v257
    %v293 = vunpack.c.l.b16 %v217
    %v294 = vunpack.c.h.b16 %v217
    %v295 = vunpack.c.l.b16 %v218
    %v296 = vunpack.c.h.b16 %v218
    %v297 = vunpack.c.l.b16 %v219
    %v298 = vunpack.c.h.b16 %v219
    %v299 = vunpack.c.l.b16 %v220
    %v300 = vunpack.c.h.b16 %v220
    %v301 = vunpack.c.l.b16 %v221
    %v302 = vunpack.c.h.b16 %v221
    %v303 = vunpack.c.l.b16 %v222
    %v304 = vunpack.c.h.b16 %v222
    %v305 = vunpack.c.l.b16 %v223
    %v306 = vunpack.c.h.b16 %v223
    %v307 = vunpack.c.l.b16 %v224
    %v308 = vunpack.c.h.b16 %v224
    %v309 = vunpack.c.l.b16 %v225
    %v310 = vunpack.c.h.b16 %v225
    %v311 = vunpack.c.l.b16 %v226
    %v312 = vunpack.c.h.b16 %v226
    %v313 = vunpack.c.l.b16 %v227
    %v314 = vunpack.c.h.b16 %v227
    %v315 = vunpack.c.l.b16 %v228
    %v316 = vunpack.c.h.b16 %v228
    %v317 = vunpack.c.l.b16 %v229
    %v318 = vunpack.c.h.b16 %v229
    %v319 = vunpack.c.l.b16 %v230
    %v320 = vunpack.c.h.b16 %v230
    %v321 = vunpack.c.l.b16 %v231
    %v322 = vunpack.c.h.b16 %v231
    %v323 = vunpack.c.l.b16 %v232
    %v324 = vunpack.c.h.b16 %v232
    %v325 = vunpack.c.l.b16 %v233
    %v326 = vunpack.c.h.b16 %v233
    %v327 = vunpack.c.l.b16 %v234
    %v328 = vunpack.c.h.b16 %v234
    %v329 = vunpack.c.l.b16 %v235
    %v330 = vunpack.c.h.b16 %v235
    %v331 = vunpack.c.l.b16 %v236
    %v332 = vunpack.c.h.b16 %v236
    %v333 = vunpack.c.l.b16 %v237
    %v334 = vunpack.c.h.b16 %v237
    %v335 = vunpack.c.l.b16 %v238
    %v336 = vunpack.c.h.b16 %v238
    %v337 = vunpack.c.l.b16 %v239
    %v338 = vunpack.c.h.b16 %v239
    %v339 = vunpack.c.l.b16 %v240
    %v340 = vunpack.c.h.b16 %v240
    %v341 = vunpack.c.l.b16 %v241
    %v342 = vunpack.c.h.b16 %v241
    %v343 = vunpack.c.l.b16 %v242
    %v344 = vunpack.c.h.b16 %v242
    %v345 = vunpack.c.l.b16 %v243
    %v346 = vunpack.c.h.b16 %v243
    %v347 = vunpack.c.l.b16 %v244
    %v348 = vunpack.c.h.b16 %v244
    %v349 = vunpack.c.l.b16 %v245
    %v350 = vunpack.c.h.b16 %v245
    %v351 = vunpack.c.l.b16 %v246
    %v352 = vunpack.c.h.b16 %v246
    %v353 = vunpack.c.l.b16 %v247
    %v354 = vunpack.c.h.b16 %v247
    %v355 = vunpack.c.l.b16 %v248
    %v356 = vunpack.c.h.b16 %v248
    %v357 = vpack.c.b16 %v295, %v293
    %v358 = vpack.c.b16 %v296, %v294
    %v359 = vpack.c.b16 %v299, %v297
    %v360 = vpack.c.b16 %v300, %v298
    %v361 = vpack.c.b16 %v303, %v301
    %v362 = vpack.c.b16 %v304, %v302
    %v363 = vpack.c.b16 %v307, %v305
    %v364 = vpack.c.b16 %v308, %v306
    %v365 = vpack.c.b16 %v311, %v309
    %v366 = vpack.c.b16 %v312, %v310
    %v367 = vpack.c.b16 %v315, %v313
    %v368 = vpack.c.b16 %v316, %v314
    %v369 = vpack.c.b16 %v319, %v317
    %v370 = vpack.c.b16 %v320, %v318
    %v371 = vpack.c.b16 %v323, %v321
    %v372 = vpack.c.b16 %v324, %v322
    %v373 = vpack.c.b16 %v327, %v325
    %v374 = vpack.c.b16 %v328, %v326
    %v375 = vpack.c.b16 %v331, %v329
    %v376 = vpack.c.b16 %v332, %v330
    %v377 = vpack.c.b16 %v335, %v333
    %v378 = vpack.c.b16 %v336, %v334
    %v379 = vpack.c.b16 %v339, %v337
    %v380 = vpack.c.b16 %v340, %v338
    %v381 = vpack.c.b16 %v343, %v341
    %v382 = vpack.c.b16 %v344, %v342
    %v383 = vpack.c.b16 %v347, %v345
    %v384 = vpack.c.b16 %v348, %v346
    %v385 = vpack.c.b16 %v351, %v349
    %v386 = vpack.c.b16 %v352, %v350
    %v387 = vpack.c.b16 %v355, %v353
    %v388 = vpack.c.b16 %v356, %v354
    %421 = vmatprep.subr.bf16.mxu0 %v372
    %422 = vmatpush1.bf16.msra.mxu0 %v371
    %423 = vmatprep.subr.bf16.mxu0 %v370
    %424 = vmatpush1.bf16.msra.mxu0 %v369
    %425 = vmatprep.subr.bf16.mxu0 %v368
    %426 = vmatpush1.bf16.msra.mxu0 %v367
    %427 = vmatprep.subr.bf16.mxu0 %v366
    %428 = vmatpush1.bf16.msra.mxu0 %v365
    %429 = vmatprep.subr.bf16.mxu0 %v364
    %430 = vmatpush1.bf16.msra.mxu0 %v363
    %431 = vmatprep.subr.bf16.mxu0 %v362
    %432 = vmatpush1.bf16.msra.mxu0 %v361
    %433 = vmatprep.subr.bf16.mxu0 %v360
    %434 = vmatpush1.bf16.msra.mxu0 %v359
    %435 = vmatprep.subr.bf16.mxu0 %v358
    %436 = vmatpush1.bf16.msra.mxu0 %v357
    %437 = vmatprep.subr.bf16.mxu0 %v388
    %438 = vmatpush2.bf16.msra.mxu0 %v387
    %439 = vmatprep.subr.bf16.mxu0 %v386
    %440 = vmatpush2.bf16.msra.mxu0 %v385
    %441 = vmatprep.subr.bf16.mxu0 %v384
    %442 = vmatpush2.bf16.msra.mxu0 %v383
    %443 = vmatprep.subr.bf16.mxu0 %v382
    %444 = vmatpush2.bf16.msra.mxu0 %v381
    %445 = vmatprep.subr.bf16.mxu0 %v380
    %446 = vmatpush2.bf16.msra.mxu0 %v379
    %447 = vmatprep.subr.bf16.mxu0 %v378
    %448 = vmatpush2.bf16.msra.mxu0 %v377
    %449 = vmatprep.subr.bf16.mxu0 %v376
    %450 = vmatpush2.bf16.msra.mxu0 %v375
    %451 = vmatprep.subr.bf16.mxu0 %v374
    %452 = vmatpush2.bf16.msra.mxu0 %v373
    %453 = vmatprep.mubr.bf16.mxu0 %v216
    %454 = vmatmul.mubr.bf16.gmra.mxu0 %v215
    %v455 = vpop.f32.mrf.mxu0
    %v456 = vadd.f32 %v254, %v455
    %v457 = vpop.f32.mrf.mxu0
    %v458 = vadd.f32 %v258, %v457
    %v459 = vpop.f32.mrf.mxu0
    %v460 = vpop.f32.mrf.mxu0
    %461 = vdwg.mxu0
    %v462 = vmax.f32 %v456, 0.0
    %v463 = vmax.f32 %v458, 0.0
    %v464 = vld [vmem:[%s7] sm:$0x3]
    %v466 = vlaneseq
    %v467 = vshrl.u32 %v466, 7
    %v468 = vsub.s32 0, %v467
    %v469 = vrot.slane %v464, %v468
    %v470 = vlaneseq
    %v471 = vshrl.u32 %v470, 7
    %v472 = vsub.s32 1, %v471
    %v473 = vrot.slane %v464, %v472
    %v476 = vmul.f32 %v462, %v469
    %v477 = vmul.f32 %v463, %v473
    %v478 = vadd.f32 %v476, %v477
    %479 = vadd.xlane.f32.xlu0 %v478
    %v480 = vpop.xlane.xlu0 %479
    %s481 = sld [smem:[#allocation2]]
    %v482 = vstv %s481
    %v483 = vadd.f32 %v480, %v482
    %vm484 = vcmask 7168
    %485 = vst.msk [vmem:[%s9] sm:$0xff] %vm484, %v483
    // Predicated region
    $region50: #{tpu_custom_call.1} parent=1 // pred_check
      _
    $region51: #{tpu_custom_call.1} parent=1 // pred_check_branch
      %487 = sbr.rel (0) target = $region53
    $region52: #{tpu_custom_call.1} parent=1 // pred_region
      _
    $region53: #{tpu_custom_call.1} parent=1 // pred_fallthru
      _
    // Predicated region
    $region54: #{tpu_custom_call.1} parent=1 // pred_check
      _
    $region55: #{tpu_custom_call.1} parent=1 // pred_check_branch
      %489 = sbr.rel (0) target = $region57
    $region56: #{tpu_custom_call.1} parent=1 // pred_region
      _
    $region57: #{tpu_custom_call.1} parent=1 // pred_fallthru
      _
    %490 = vsyncpa [#allocation4], 1
    %491 = vsyncpa [#allocation6], 1

</llo_original>
